<compile_context>
chip_gen: v7x
topology: tpu7x:2x2x1
jax: 0.10.0
libtpu: 0.0.40
codegen_flags: <defaults>
</compile_context>

<pallas_src>
import functools

import jax
import jax.numpy as jnp
from jax.experimental import pallas as pl
from jax.experimental.pallas import tpu as pltpu

HIDDEN_DIM = 100     # logical LayerNorm width (must match PyTorch)
HIDDEN_PAD = 128     # lane-dense padded hidden width (keep 128; do NOT pad to 256)
LEAKY_SLOPE = 0.01   # nn.LeakyReLU default
LN_EPS = 1e-5        # nn.LayerNorm default
NEG_INF = -1e30      # bias for padded logit columns (large finite, not -inf)


def _round_up(n, m):
    return ((n + m - 1) // m) * m


def _leaky_relu(x):
    return jnp.where(x >= 0, x, LEAKY_SLOPE * x)


def _layer_norm_fused(h, gamma, beta):
    # Padded hidden channels are exactly zero pre-LN (zero weight columns and
    # zero bias), so they contribute nothing to sum / sum-of-squares; we
    # normalize by the logical HIDDEN_DIM, not the padded 128.  gamma/beta are
    # zero on padded channels, so padded outputs stay exactly 0.
    inv_n = 1.0 / HIDDEN_DIM
    s = jnp.sum(h, axis=-1, keepdims=True)
    ss = jnp.sum(h * h, axis=-1, keepdims=True)
    mean = s * inv_n
    var = ss * inv_n - mean * mean
    inv = jax.lax.rsqrt(var + LN_EPS)
    return (h - mean) * inv * gamma + beta


def actor_kernel(x_ref,
                 w1_ref, b1_ref, g1_ref, be1_ref,
                 w2_ref, b2_ref, g2_ref, be2_ref,
                 wpi_ref, bpi_ref,
                 out_ref, *, num_action):
    x = x_ref[...]  # f32

    # Layer 1: Linear -> LeakyReLU -> LayerNorm
    h1 = jnp.dot(x, w1_ref[...], preferred_element_type=jnp.float32) + b1_ref[...]
    h1 = _layer_norm_fused(_leaky_relu(h1), g1_ref[...], be1_ref[...])

    # Layer 2: Linear -> LeakyReLU -> LayerNorm
    h2 = jnp.dot(h1, w2_ref[...], preferred_element_type=jnp.float32) + b2_ref[...]
    h2 = _layer_norm_fused(_leaky_relu(h2), g2_ref[...], be2_ref[...])

    # Policy head (padded columns get logits ~= NEG_INF via the padded bias,
    # so they never win the max and exp-underflow to exactly 0 in the sum).
    logits = jnp.dot(h2, wpi_ref[...], preferred_element_type=jnp.float32) + bpi_ref[...]

    m = jnp.max(logits, axis=-1, keepdims=True)
    lse = m + jnp.log(jnp.sum(jnp.exp(logits - m), axis=-1, keepdims=True))

    # Single lane-dense output slab: logits everywhere, lse stashed in the
    # spare padded column `num_action`.  Halves HBM writeback vs. two slabs.
    col = jax.lax.broadcasted_iota(jnp.int32, logits.shape, 1)
    out_ref[...] = jnp.where(col == num_action, lse, logits)


def _pad2(a, rows, cols, fill=0.0):
    r, c = a.shape
    return jnp.pad(a, ((0, rows - r), (0, cols - c)), constant_values=fill)


def make_actor_forward(params):
    """Pad parameters ONCE and return a jitted forward(x) -> (logits, lg_sm).

    `params` holds linear weights as (in_features, out_features), i.e. the
    transpose of PyTorch's (out, in) storage.
    """
    w1 = jnp.asarray(params["w1"], jnp.float32)
    ip_dim = w1.shape[0]
    num_action = int(jnp.asarray(params["w_pi"]).shape[1])
    # +1 guarantees a spare padded column to stash the per-row logsumexp.
    a_pad = _round_up(num_action + 1, 128)

    # ---- pad params to lane-dense widths (done once, not per call) ---------
    w1p = _pad2(w1, ip_dim, HIDDEN_PAD)
    w2p = _pad2(jnp.asarray(params["w2"], jnp.float32), HIDDEN_PAD, HIDDEN_PAD)
    wpip = _pad2(jnp.asarray(params["w_pi"], jnp.float32), HIDDEN_PAD, a_pad)

    def row(v, width, fill=0.0):
        v = jnp.asarray(v, jnp.float32).reshape(1, -1)
        return _pad2(v, 1, width, fill)

    b1p, g1p, be1p = (row(params["b1"], HIDDEN_PAD),
                      row(params["g1"], HIDDEN_PAD),
                      row(params["be1"], HIDDEN_PAD))
    b2p, g2p, be2p = (row(params["b2"], HIDDEN_PAD),
                      row(params["g2"], HIDDEN_PAD),
                      row(params["be2"], HIDDEN_PAD))
    bpip = row(params["b_pi"], a_pad, fill=NEG_INF)

    kernel = functools.partial(actor_kernel, num_action=num_action)

    @jax.jit
    def forward(x):
        x = jnp.asarray(x, jnp.float32)
        B = x.shape[0]

        # ---- batch tiling ---------------------------------------------------
        # >= 2 grid steps for multi-row batches so dimension_semantics=
        # ("parallel",) shards the batch across v7x's 2 TensorCores; tile
        # capped at 1024 rows (~85-86% of HBM roofline per measurements),
        # VMEM footprint stays ~1-2 MiB so no vmem_limit_bytes needed.
        Bp8 = _round_up(max(B, 1), 8)                      # f32 sublane multiple
        TB = min(1024, _round_up(pl.cdiv(Bp8, 2), 8))
        Bp = _round_up(Bp8, TB)
        if Bp != B:
            x = jnp.pad(x, ((0, Bp - B), (0, 0)))
        grid = (Bp // TB,)

        x_spec = pl.BlockSpec((TB, ip_dim), lambda i: (i, 0))
        const = lambda shape: pl.BlockSpec(shape, lambda i: (0, 0))  # resident weights
        in_specs = [
            x_spec,
            const((ip_dim, HIDDEN_PAD)), const((1, HIDDEN_PAD)),
            const((1, HIDDEN_PAD)), const((1, HIDDEN_PAD)),
            const((HIDDEN_PAD, HIDDEN_PAD)), const((1, HIDDEN_PAD)),
            const((1, HIDDEN_PAD)), const((1, HIDDEN_PAD)),
            const((HIDDEN_PAD, a_pad)), const((1, a_pad)),
        ]
        out_spec = pl.BlockSpec((TB, a_pad), lambda i: (i, 0))

        flops = 2 * Bp * (ip_dim * HIDDEN_PAD
                          + HIDDEN_PAD * HIDDEN_PAD
                          + HIDDEN_PAD * a_pad)
        bytes_accessed = 4 * (Bp * ip_dim
                              + ip_dim * HIDDEN_PAD + HIDDEN_PAD * HIDDEN_PAD
                              + HIDDEN_PAD * a_pad
                              + 7 * HIDDEN_PAD + a_pad
                              + Bp * a_pad)
        cost = pl.CostEstimate(flops=flops,
                               transcendentals=Bp * (a_pad + 3),
                               bytes_accessed=bytes_accessed)

        slab = pl.pallas_call(
            kernel,
            out_shape=jax.ShapeDtypeStruct((Bp, a_pad), jnp.float32),
            grid=grid,
            in_specs=in_specs,
            out_specs=out_spec,
            compiler_params=pltpu.CompilerParams(
                dimension_semantics=("parallel",)),
            cost_estimate=cost,
        )(x, w1p, b1p, g1p, be1p, w2p, b2p, g2p, be2p, wpip, bpip)

        logits = slab[:B, :num_action]
        lse = slab[:B, num_action:num_action + 1]
        lg_sm = logits - lse
        return logits, lg_sm

    return forward


def actor_forward(x, params):
    """Convenience one-shot wrapper (pads params per call).
    Prefer make_actor_forward(params) and reuse the returned callable."""
    return make_actor_forward(params)(x)


# ---------------------------------------------------------------------------
# Pure-JAX reference (mirrors the PyTorch module exactly) and param init.
# ---------------------------------------------------------------------------
def actor_reference(x, params):
    x = jnp.asarray(x, jnp.float32)

    def ln(h, g, b):
        mean = jnp.mean(h, axis=-1, keepdims=True)
        var = jnp.mean((h - mean) ** 2, axis=-1, keepdims=True)
        return (h - mean) * jax.lax.rsqrt(var + LN_EPS) * g + b

    h = x @ params["w1"] + params["b1"]
    h = ln(_leaky_relu(h), params["g1"], params["be1"])
    h = h @ params["w2"] + params["b2"]
    h = ln(_leaky_relu(h), params["g2"], params["be2"])
    logits = h @ params["w_pi"] + params["b_pi"]
    lgsm = jax.nn.log_softmax(logits, axis=-1)
    return logits, lgsm


def init_params(key, ip_dim, num_action):
    ks = jax.random.split(key, 6)
    s1 = 1.0 / jnp.sqrt(ip_dim)
    s2 = 1.0 / jnp.sqrt(HIDDEN_DIM)
    # Linear weights stored as (in, out) = transpose of PyTorch (out, in).
    return {
        "w1": jax.random.uniform(ks[0], (ip_dim, HIDDEN_DIM), jnp.float32, -s1, s1),
        "b1": jax.random.uniform(ks[1], (HIDDEN_DIM,), jnp.float32, -s1, s1),
        "g1": jnp.ones((HIDDEN_DIM,), jnp.float32),
        "be1": jnp.zeros((HIDDEN_DIM,), jnp.float32),
        "w2": jax.random.uniform(ks[2], (HIDDEN_DIM, HIDDEN_DIM), jnp.float32, -s2, s2),
        "b2": jax.random.uniform(ks[3], (HIDDEN_DIM,), jnp.float32, -s2, s2),
        "g2": jnp.ones((HIDDEN_DIM,), jnp.float32),
        "be2": jnp.zeros((HIDDEN_DIM,), jnp.float32),
        "w_pi": jax.random.uniform(ks[4], (HIDDEN_DIM, num_action), jnp.float32, -s2, s2),
        "b_pi": jax.random.uniform(ks[5], (num_action,), jnp.float32, -s2, s2),
    }


if __name__ == "__main__":
    key = jax.random.PRNGKey(0)
    k_x, k_x2, k_p = jax.random.split(key, 3)

    B, IP_DIM, NUM_ACTION = 8, 32, 6
    params = init_params(k_p, IP_DIM, NUM_ACTION)
    forward = make_actor_forward(params)   # pads params once

    # --- small RL-style batch ------------------------------------------------
    x = jax.random.normal(k_x, (B, IP_DIM), jnp.float32)
    logits, lg_sm = forward(x)
    jax.block_until_ready((logits, lg_sm))

    ref_logits, ref_lgsm = actor_reference(x, params)
    assert logits.shape == (B, NUM_ACTION)
    assert lg_sm.shape == (B, NUM_ACTION)
    assert bool(jnp.allclose(logits, ref_logits, atol=2e-2, rtol=2e-2))
    assert bool(jnp.allclose(lg_sm, ref_lgsm, atol=2e-2, rtol=2e-2))

    # --- second, non-multiple-of-8 batch: exercises batch padding and the
    # 2-step grid path (both v7x TensorCores get a tile). -------------------
    B2 = 50
    x2 = jax.random.normal(k_x2, (B2, IP_DIM), jnp.float32)
    logits2, lg_sm2 = forward(x2)
    jax.block_until_ready((logits2, lg_sm2))

    ref_logits2, ref_lgsm2 = actor_reference(x2, params)
    assert logits2.shape == (B2, NUM_ACTION)
    assert bool(jnp.allclose(logits2, ref_logits2, atol=2e-2, rtol=2e-2))
    assert bool(jnp.allclose(lg_sm2, ref_lgsm2, atol=2e-2, rtol=2e-2))

    # Sanity: log-softmax rows should exp-sum to 1.
    row_sums = jnp.sum(jnp.exp(lg_sm), axis=-1)
    assert bool(jnp.all(jnp.abs(row_sums - 1.0) < 1e-3))

    print("KERNEL_OK")
</pallas_src>

<mosaic_0001>
module attributes {stable_mosaic.version = 11 : i64} {
  func.func @actor_kernel(%arg0: i32, %arg1: memref<8x32xf32, #tpu.memory_space<vmem>>, %arg2: memref<32x128xf32, #tpu.memory_space<vmem>>, %arg3: memref<1x128xf32, #tpu.memory_space<vmem>>, %arg4: memref<1x128xf32, #tpu.memory_space<vmem>>, %arg5: memref<1x128xf32, #tpu.memory_space<vmem>>, %arg6: memref<128x128xf32, #tpu.memory_space<vmem>>, %arg7: memref<1x128xf32, #tpu.memory_space<vmem>>, %arg8: memref<1x128xf32, #tpu.memory_space<vmem>>, %arg9: memref<1x128xf32, #tpu.memory_space<vmem>>, %arg10: memref<128x128xf32, #tpu.memory_space<vmem>>, %arg11: memref<1x128xf32, #tpu.memory_space<vmem>>, %arg12: memref<8x128xf32, #tpu.memory_space<vmem>>) attributes {dimension_semantics = [#tpu.dimension_semantics<parallel>], iteration_bounds = array<i64: 1>, scalar_prefetch = 0 : i64, scratch_operands = 0 : i64, tpu.core_type = #tpu.core_type<tc>, window_params = [{transform_indices = @transform_0, window_bounds = array<i64: 8, 32>}, {pipeline_mode = #tpu.pipeline_mode<synchronous>, transform_indices = @transform_1, window_bounds = array<i64: 32, 128>}, {pipeline_mode = #tpu.pipeline_mode<synchronous>, transform_indices = @transform_2, window_bounds = array<i64: 1, 128>}, {pipeline_mode = #tpu.pipeline_mode<synchronous>, transform_indices = @transform_3, window_bounds = array<i64: 1, 128>}, {pipeline_mode = #tpu.pipeline_mode<synchronous>, transform_indices = @transform_4, window_bounds = array<i64: 1, 128>}, {pipeline_mode = #tpu.pipeline_mode<synchronous>, transform_indices = @transform_5, window_bounds = array<i64: 128, 128>}, {pipeline_mode = #tpu.pipeline_mode<synchronous>, transform_indices = @transform_6, window_bounds = array<i64: 1, 128>}, {pipeline_mode = #tpu.pipeline_mode<synchronous>, transform_indices = @transform_7, window_bounds = array<i64: 1, 128>}, {pipeline_mode = #tpu.pipeline_mode<synchronous>, transform_indices = @transform_8, window_bounds = array<i64: 1, 128>}, {pipeline_mode = #tpu.pipeline_mode<synchronous>, transform_indices = @transform_9, window_bounds = array<i64: 128, 128>}, {pipeline_mode = #tpu.pipeline_mode<synchronous>, transform_indices = @transform_10, window_bounds = array<i64: 1, 128>}, {transform_indices = @transform_11, window_bounds = array<i64: 8, 128>}]} {
    %c0 = arith.constant 0 : index
    %c0_0 = arith.constant 0 : index
    %0 = vector.load %arg1[%c0, %c0_0] : memref<8x32xf32, #tpu.memory_space<vmem>>, vector<8x32xf32>
    %c0_1 = arith.constant 0 : index
    %c0_2 = arith.constant 0 : index
    %1 = vector.load %arg2[%c0_1, %c0_2] : memref<32x128xf32, #tpu.memory_space<vmem>>, vector<32x128xf32>
    %cst = arith.constant dense<0.000000e+00> : vector<8x128xf32>
    %2 = tpu.matmul %0, %1, %cst {dimension_numbers = #tpu.dot_dimension_numbers<[1], [0], [0], [1], [0, 0, 1, 1], [], []>} : vector<8x32xf32>, vector<32x128xf32>, vector<8x128xf32> -> vector<8x128xf32>
    %c0_3 = arith.constant 0 : index
    %c0_4 = arith.constant 0 : index
    %3 = vector.load %arg3[%c0_3, %c0_4] : memref<1x128xf32, #tpu.memory_space<vmem>>, vector<1x128xf32>
    %4 = vector.broadcast %3 : vector<1x128xf32> to vector<8x128xf32>
    %5 = arith.addf %2, %4 : vector<8x128xf32>
    %cst_5 = arith.constant 0.000000e+00 : f32
    %6 = vector.broadcast %cst_5 : f32 to vector<8x128xf32>
    %7 = arith.cmpf oge, %5, %6 : vector<8x128xf32>
    %cst_6 = arith.constant 0.00999999977 : f32
    %8 = vector.broadcast %cst_6 : f32 to vector<8x128xf32>
    %9 = arith.mulf %8, %5 : vector<8x128xf32>
    %10 = arith.select %7, %5, %9 : vector<8x128xi1>, vector<8x128xf32>
    %c0_7 = arith.constant 0 : index
    %c0_8 = arith.constant 0 : index
    %11 = vector.load %arg4[%c0_7, %c0_8] : memref<1x128xf32, #tpu.memory_space<vmem>>, vector<1x128xf32>
    %c0_9 = arith.constant 0 : index
    %c0_10 = arith.constant 0 : index
    %12 = vector.load %arg5[%c0_9, %c0_10] : memref<1x128xf32, #tpu.memory_space<vmem>>, vector<1x128xf32>
    %cst_11 = arith.constant dense<0.000000e+00> : vector<8xf32>
    %13 = vector.multi_reduction <add>, %10, %cst_11 [1] : vector<8x128xf32> to vector<8xf32>
    %14 = vector.shape_cast %13 : vector<8xf32> to vector<8x1xf32>
    %15 = arith.mulf %10, %10 : vector<8x128xf32>
    %cst_12 = arith.constant dense<0.000000e+00> : vector<8xf32>
    %16 = vector.multi_reduction <add>, %15, %cst_12 [1] : vector<8x128xf32> to vector<8xf32>
    %17 = vector.shape_cast %16 : vector<8xf32> to vector<8x1xf32>
    %cst_13 = arith.constant 0.00999999977 : f32
    %18 = vector.broadcast %cst_13 : f32 to vector<8x1xf32>
    %19 = arith.mulf %14, %18 : vector<8x1xf32>
    %cst_14 = arith.constant 0.00999999977 : f32
    %20 = vector.broadcast %cst_14 : f32 to vector<8x1xf32>
    %21 = arith.mulf %17, %20 : vector<8x1xf32>
    %22 = arith.mulf %19, %19 : vector<8x1xf32>
    %23 = arith.subf %21, %22 : vector<8x1xf32>
    %cst_15 = arith.constant 9.99999974E-6 : f32
    %24 = vector.broadcast %cst_15 : f32 to vector<8x1xf32>
    %25 = arith.addf %23, %24 : vector<8x1xf32>
    %26 = math.rsqrt %25 : vector<8x1xf32>
    %27 = vector.broadcast %19 : vector<8x1xf32> to vector<8x128xf32>
    %28 = arith.subf %10, %27 : vector<8x128xf32>
    %29 = vector.broadcast %26 : vector<8x1xf32> to vector<8x128xf32>
    %30 = arith.mulf %28, %29 : vector<8x128xf32>
    %31 = vector.broadcast %11 : vector<1x128xf32> to vector<8x128xf32>
    %32 = arith.mulf %30, %31 : vector<8x128xf32>
    %33 = vector.broadcast %12 : vector<1x128xf32> to vector<8x128xf32>
    %34 = arith.addf %32, %33 : vector<8x128xf32>
    %c0_16 = arith.constant 0 : index
    %c0_17 = arith.constant 0 : index
    %35 = vector.load %arg6[%c0_16, %c0_17] : memref<128x128xf32, #tpu.memory_space<vmem>>, vector<128x128xf32>
    %cst_18 = arith.constant dense<0.000000e+00> : vector<8x128xf32>
    %36 = tpu.matmul %34, %35, %cst_18 {dimension_numbers = #tpu.dot_dimension_numbers<[1], [0], [0], [1], [0, 0, 1, 1], [], []>} : vector<8x128xf32>, vector<128x128xf32>, vector<8x128xf32> -> vector<8x128xf32>
    %c0_19 = arith.constant 0 : index
    %c0_20 = arith.constant 0 : index
    %37 = vector.load %arg7[%c0_19, %c0_20] : memref<1x128xf32, #tpu.memory_space<vmem>>, vector<1x128xf32>
    %38 = vector.broadcast %37 : vector<1x128xf32> to vector<8x128xf32>
    %39 = arith.addf %36, %38 : vector<8x128xf32>
    %cst_21 = arith.constant 0.000000e+00 : f32
    %40 = vector.broadcast %cst_21 : f32 to vector<8x128xf32>
    %41 = arith.cmpf oge, %39, %40 : vector<8x128xf32>
    %cst_22 = arith.constant 0.00999999977 : f32
    %42 = vector.broadcast %cst_22 : f32 to vector<8x128xf32>
    %43 = arith.mulf %42, %39 : vector<8x128xf32>
    %44 = arith.select %41, %39, %43 : vector<8x128xi1>, vector<8x128xf32>
    %c0_23 = arith.constant 0 : index
    %c0_24 = arith.constant 0 : index
    %45 = vector.load %arg8[%c0_23, %c0_24] : memref<1x128xf32, #tpu.memory_space<vmem>>, vector<1x128xf32>
    %c0_25 = arith.constant 0 : index
    %c0_26 = arith.constant 0 : index
    %46 = vector.load %arg9[%c0_25, %c0_26] : memref<1x128xf32, #tpu.memory_space<vmem>>, vector<1x128xf32>
    %cst_27 = arith.constant dense<0.000000e+00> : vector<8xf32>
    %47 = vector.multi_reduction <add>, %44, %cst_27 [1] : vector<8x128xf32> to vector<8xf32>
    %48 = vector.shape_cast %47 : vector<8xf32> to vector<8x1xf32>
    %49 = arith.mulf %44, %44 : vector<8x128xf32>
    %cst_28 = arith.constant dense<0.000000e+00> : vector<8xf32>
    %50 = vector.multi_reduction <add>, %49, %cst_28 [1] : vector<8x128xf32> to vector<8xf32>
    %51 = vector.shape_cast %50 : vector<8xf32> to vector<8x1xf32>
    %cst_29 = arith.constant 0.00999999977 : f32
    %52 = vector.broadcast %cst_29 : f32 to vector<8x1xf32>
    %53 = arith.mulf %48, %52 : vector<8x1xf32>
    %cst_30 = arith.constant 0.00999999977 : f32
    %54 = vector.broadcast %cst_30 : f32 to vector<8x1xf32>
    %55 = arith.mulf %51, %54 : vector<8x1xf32>
    %56 = arith.mulf %53, %53 : vector<8x1xf32>
    %57 = arith.subf %55, %56 : vector<8x1xf32>
    %cst_31 = arith.constant 9.99999974E-6 : f32
    %58 = vector.broadcast %cst_31 : f32 to vector<8x1xf32>
    %59 = arith.addf %57, %58 : vector<8x1xf32>
    %60 = math.rsqrt %59 : vector<8x1xf32>
    %61 = vector.broadcast %53 : vector<8x1xf32> to vector<8x128xf32>
    %62 = arith.subf %44, %61 : vector<8x128xf32>
    %63 = vector.broadcast %60 : vector<8x1xf32> to vector<8x128xf32>
    %64 = arith.mulf %62, %63 : vector<8x128xf32>
    %65 = vector.broadcast %45 : vector<1x128xf32> to vector<8x128xf32>
    %66 = arith.mulf %64, %65 : vector<8x128xf32>
    %67 = vector.broadcast %46 : vector<1x128xf32> to vector<8x128xf32>
    %68 = arith.addf %66, %67 : vector<8x128xf32>
    %c0_32 = arith.constant 0 : index
    %c0_33 = arith.constant 0 : index
    %69 = vector.load %arg10[%c0_32, %c0_33] : memref<128x128xf32, #tpu.memory_space<vmem>>, vector<128x128xf32>
    %cst_34 = arith.constant dense<0.000000e+00> : vector<8x128xf32>
    %70 = tpu.matmul %68, %69, %cst_34 {dimension_numbers = #tpu.dot_dimension_numbers<[1], [0], [0], [1], [0, 0, 1, 1], [], []>} : vector<8x128xf32>, vector<128x128xf32>, vector<8x128xf32> -> vector<8x128xf32>
    %c0_35 = arith.constant 0 : index
    %c0_36 = arith.constant 0 : index
    %71 = vector.load %arg11[%c0_35, %c0_36] : memref<1x128xf32, #tpu.memory_space<vmem>>, vector<1x128xf32>
    %72 = vector.broadcast %71 : vector<1x128xf32> to vector<8x128xf32>
    %73 = arith.addf %70, %72 : vector<8x128xf32>
    %cst_37 = arith.constant dense<0xFF800000> : vector<8xf32>
    %74 = vector.multi_reduction <maximumf>, %73, %cst_37 [1] : vector<8x128xf32> to vector<8xf32>
    %75 = vector.shape_cast %74 : vector<8xf32> to vector<8x1xf32>
    %76 = vector.broadcast %75 : vector<8x1xf32> to vector<8x128xf32>
    %77 = arith.subf %73, %76 : vector<8x128xf32>
    %78 = math.exp %77 : vector<8x128xf32>
    %cst_38 = arith.constant dense<0.000000e+00> : vector<8xf32>
    %79 = vector.multi_reduction <add>, %78, %cst_38 [1] : vector<8x128xf32> to vector<8xf32>
    %80 = vector.shape_cast %79 : vector<8xf32> to vector<8x1xf32>
    %81 = math.log %80 : vector<8x1xf32>
    %82 = arith.addf %75, %81 : vector<8x1xf32>
    %83 = tpu.iota {dimensions = array<i32: 1>} : vector<8x128xi32>
    %c6_i32 = arith.constant 6 : i32
    %84 = vector.broadcast %c6_i32 : i32 to vector<8x128xi32>
    %85 = arith.cmpi eq, %83, %84 : vector<8x128xi32>
    %86 = vector.shape_cast %82 : vector<8x1xf32> to vector<8x1xf32>
    %87 = vector.broadcast %86 : vector<8x1xf32> to vector<8x128xf32>
    %88 = arith.select %85, %87, %73 : vector<8x128xi1>, vector<8x128xf32>
    %c0_39 = arith.constant 0 : index
    %c0_40 = arith.constant 0 : index
    %89 = vector.load %arg12[%c0_39, %c0_40] : memref<8x128xf32, #tpu.memory_space<vmem>>, vector<8x128xf32>
    tpu.vector_store %arg12[%c0_39, %c0_40], %88 {strides = array<i32>} : memref<8x128xf32, #tpu.memory_space<vmem>>, vector<8x128xf32>,
    return
  }
  func.func @transform_0(%arg0: i32) -> (i32, i32) {
    %c0_i32 = arith.constant 0 : i32
    %c0_i32_0 = arith.constant 0 : i32
    return %arg0, %c0_i32 : i32, i32
  }
  func.func @transform_1(%arg0: i32) -> (i32, i32) {
    %c0_i32 = arith.constant 0 : i32
    %c0_i32_0 = arith.constant 0 : i32
    %c0_i32_1 = arith.constant 0 : i32
    return %c0_i32, %c0_i32_0 : i32, i32
  }
  func.func @transform_2(%arg0: i32) -> (i32, i32) {
    %c0_i32 = arith.constant 0 : i32
    %c0_i32_0 = arith.constant 0 : i32
    %c0_i32_1 = arith.constant 0 : i32
    return %c0_i32, %c0_i32_0 : i32, i32
  }
  func.func @transform_3(%arg0: i32) -> (i32, i32) {
    %c0_i32 = arith.constant 0 : i32
    %c0_i32_0 = arith.constant 0 : i32
    %c0_i32_1 = arith.constant 0 : i32
    return %c0_i32, %c0_i32_0 : i32, i32
  }
  func.func @transform_4(%arg0: i32) -> (i32, i32) {
    %c0_i32 = arith.constant 0 : i32
    %c0_i32_0 = arith.constant 0 : i32
    %c0_i32_1 = arith.constant 0 : i32
    return %c0_i32, %c0_i32_0 : i32, i32
  }
  func.func @transform_5(%arg0: i32) -> (i32, i32) {
    %c0_i32 = arith.constant 0 : i32
    %c0_i32_0 = arith.constant 0 : i32
    %c0_i32_1 = arith.constant 0 : i32
    return %c0_i32, %c0_i32_0 : i32, i32
  }
  func.func @transform_6(%arg0: i32) -> (i32, i32) {
    %c0_i32 = arith.constant 0 : i32
    %c0_i32_0 = arith.constant 0 : i32
    %c0_i32_1 = arith.constant 0 : i32
    return %c0_i32, %c0_i32_0 : i32, i32
  }
  func.func @transform_7(%arg0: i32) -> (i32, i32) {
    %c0_i32 = arith.constant 0 : i32
    %c0_i32_0 = arith.constant 0 : i32
    %c0_i32_1 = arith.constant 0 : i32
    return %c0_i32, %c0_i32_0 : i32, i32
  }
  func.func @transform_8(%arg0: i32) -> (i32, i32) {
    %c0_i32 = arith.constant 0 : i32
    %c0_i32_0 = arith.constant 0 : i32
    %c0_i32_1 = arith.constant 0 : i32
    return %c0_i32, %c0_i32_0 : i32, i32
  }
  func.func @transform_9(%arg0: i32) -> (i32, i32) {
    %c0_i32 = arith.constant 0 : i32
    %c0_i32_0 = arith.constant 0 : i32
    %c0_i32_1 = arith.constant 0 : i32
    return %c0_i32, %c0_i32_0 : i32, i32
  }
  func.func @transform_10(%arg0: i32) -> (i32, i32) {
    %c0_i32 = arith.constant 0 : i32
    %c0_i32_0 = arith.constant 0 : i32
    %c0_i32_1 = arith.constant 0 : i32
    return %c0_i32, %c0_i32_0 : i32, i32
  }
  func.func @transform_11(%arg0: i32) -> (i32, i32) {
    %c0_i32 = arith.constant 0 : i32
    %c0_i32_0 = arith.constant 0 : i32
    return %arg0, %c0_i32 : i32, i32
  }
}

</mosaic_0001>

<llo_original>
// kernel: forward.1
$region0: #{forward.1}
  #allocation0 [shape = 'u32[]', space=smem, size = 0x4, offset = 0x4, fixed_abs, tag = 'smem constant byte address 0x4 - core index']
  #allocation1 [shape = 'u32[144,128]{1,0:T(1,128)}', space=vmem, size = 0x12000, scoped, tag = 'internal scratch']
  %s0 = inlined_call_operand.hbm [shape: f32[8,32], index: 0, kind: input, shape index: {}]
  %s1 = inlined_call_operand.hbm [shape: f32[32,128], index: 1, kind: input, shape index: {}]
  %s2 = inlined_call_operand.vmem [shape: f32[1,128], index: 2, kind: input, shape index: {}]
  %s3 = inlined_call_operand.vmem [shape: f32[1,128], index: 3, kind: input, shape index: {}, may-alias: {3,7}]
  %s4 = inlined_call_operand.vmem [shape: f32[1,128], index: 4, kind: input, shape index: {}, may-alias: {4,8}]
  %s5 = inlined_call_operand.hbm [shape: f32[128,128], index: 5, kind: input, shape index: {}]
  %s6 = inlined_call_operand.vmem [shape: f32[1,128], index: 6, kind: input, shape index: {}]
  %s7 = inlined_call_operand.vmem [shape: f32[1,128], index: 7, kind: input, shape index: {}, may-alias: {3,7}]
  %s8 = inlined_call_operand.vmem [shape: f32[1,128], index: 8, kind: input, shape index: {}, may-alias: {4,8}]
  %s9 = inlined_call_operand.hbm [shape: f32[128,128], index: 9, kind: input, shape index: {}]
  %s10 = inlined_call_operand.vmem [shape: f32[1,128], index: 10, kind: input, shape index: {}]
  %s11 = inlined_call_operand.vmem [shape: f32[8,128], index: 11, kind: output, shape index: {}]
  %s12 = sld [smem:[#allocation0]]
  $region70: #{forward.1} parent=0
    _
  %s14 = ssub.s32 1, %s12
  %s15 = scalar_select 0, %s14, %s12
  $region1: #{forward.1} parent=0
    #allocation2 [shape = 'u8[4096]{0}', space=vmem, size = 0x1000, scoped, tag = 'input window, operand 0, single buffered']
    #allocation3 [shape = 's32[1]{0}', space=sflag, size = 0x4, scoped, tag = 'scoped memory for forward.1']
    #allocation4 [shape = 'u8[16384]{0}', space=vmem, size = 0x4000, scoped, tag = 'input window, operand 1, single buffered']
    #allocation5 [shape = 's32[1]{0}', space=sflag, size = 0x4, scoped, tag = 'scoped memory for forward.1']
    #allocation6 [shape = 'u8[65536]{0}', space=vmem, size = 0x10000, scoped, tag = 'input window, operand 5, single buffered']
    #allocation7 [shape = 'u8[65536]{0}', space=vmem, size = 0x10000, scoped, tag = 'input window, operand 9, single buffered']
    #allocation8 [shape = 's32[1]{0}', space=sflag, size = 0x4, scoped, tag = 'scoped memory for forward.1']
    %16 = vsyncpa [#allocation3], 0
    %17 = vsyncpa [#allocation5], 0
    %18 = vsyncpa [#allocation8], 0
    // Predicated region
    $region2: #{forward.1} parent=1 // pred_check
      _
    $region3: #{forward.1} parent=1 // pred_check_branch
      %20 = sbr.rel (0) target = $region5
    $region4: #{forward.1} parent=1 // pred_region
      %s22 = ssub.s32 128, 128
      %23 = vsyncadd [#allocation3], %s22
      %s25 = sshll.u32 [#allocation2], 4
      %s26 = int_to_ptr.vmem [resolvable:$true] %s25
      %28 = dma.hbm_to_vmem [thread:$0]  %s0, 128, %s26, [#allocation3]
    $region5: #{forward.1} parent=1 // pred_fallthru
      _
    // Predicated region
    $region6: #{forward.1} parent=1 // pred_check
      _
    $region7: #{forward.1} parent=1 // pred_check_branch
      %30 = sbr.rel (0) target = $region9
    $region8: #{forward.1} parent=1 // pred_region
      %s32 = ssub.s32 512, 512
      %33 = vsyncadd [#allocation5], %s32
      %s34 = sshll.u32 [#allocation4], 4
      %s35 = int_to_ptr.vmem [resolvable:$true] %s34
      %40 = dma.hbm_to_vmem [thread:$0]  %s1, 512, %s35, [#allocation5], 128, 128, 8
    $region9: #{forward.1} parent=1 // pred_fallthru
      _
    // Predicated region
    $region10: #{forward.1} parent=1 // pred_check
      _
    $region11: #{forward.1} parent=1 // pred_check_branch
      %42 = sbr.rel (0) target = $region13
    $region12: #{forward.1} parent=1 // pred_region
      _
    $region13: #{forward.1} parent=1 // pred_fallthru
      _
    // Predicated region
    $region14: #{forward.1} parent=1 // pred_check
      _
    $region15: #{forward.1} parent=1 // pred_check_branch
      %44 = sbr.rel (0) target = $region17
    $region16: #{forward.1} parent=1 // pred_region
      _
    $region17: #{forward.1} parent=1 // pred_fallthru
      _
    // Predicated region
    $region18: #{forward.1} parent=1 // pred_check
      _
    $region19: #{forward.1} parent=1 // pred_check_branch
      %46 = sbr.rel (0) target = $region21
    $region20: #{forward.1} parent=1 // pred_region
      _
    $region21: #{forward.1} parent=1 // pred_fallthru
      _
    // Predicated region
    $region22: #{forward.1} parent=1 // pred_check
      _
    $region23: #{forward.1} parent=1 // pred_check_branch
      %48 = sbr.rel (0) target = $region25
    $region24: #{forward.1} parent=1 // pred_region
      %s50 = ssub.s32 2048, 2048
      %51 = vsyncadd [#allocation5], %s50
      %s52 = sshll.u32 [#allocation6], 4
      %s53 = int_to_ptr.vmem [resolvable:$true] %s52
      %58 = dma.hbm_to_vmem [thread:$0]  %s5, 2048, %s53, [#allocation5], 128, 128, 8
    $region25: #{forward.1} parent=1 // pred_fallthru
      _
    // Predicated region
    $region26: #{forward.1} parent=1 // pred_check
      _
    $region27: #{forward.1} parent=1 // pred_check_branch
      %60 = sbr.rel (0) target = $region29
    $region28: #{forward.1} parent=1 // pred_region
      _
    $region29: #{forward.1} parent=1 // pred_fallthru
      _
    // Predicated region
    $region30: #{forward.1} parent=1 // pred_check
      _
    $region31: #{forward.1} parent=1 // pred_check_branch
      %62 = sbr.rel (0) target = $region33
    $region32: #{forward.1} parent=1 // pred_region
      _
    $region33: #{forward.1} parent=1 // pred_fallthru
      _
    // Predicated region
    $region34: #{forward.1} parent=1 // pred_check
      _
    $region35: #{forward.1} parent=1 // pred_check_branch
      %64 = sbr.rel (0) target = $region37
    $region36: #{forward.1} parent=1 // pred_region
      _
    $region37: #{forward.1} parent=1 // pred_fallthru
      _
    // Predicated region
    $region38: #{forward.1} parent=1 // pred_check
      _
    $region39: #{forward.1} parent=1 // pred_check_branch
      %66 = sbr.rel (0) target = $region41
    $region40: #{forward.1} parent=1 // pred_region
      %s68 = ssub.s32 2048, 2048
      %69 = vsyncadd [#allocation8], %s68
      %s70 = sshll.u32 [#allocation7], 4
      %s71 = int_to_ptr.vmem [resolvable:$true] %s70
      %76 = dma.hbm_to_vmem [thread:$0]  %s9, 2048, %s71, [#allocation8], 128, 128, 8
    $region41: #{forward.1} parent=1 // pred_fallthru
      _
    // Predicated region
    $region42: #{forward.1} parent=1 // pred_check
      _
    $region43: #{forward.1} parent=1 // pred_check_branch
      %78 = sbr.rel (0) target = $region45
    $region44: #{forward.1} parent=1 // pred_region
      _
    $region45: #{forward.1} parent=1 // pred_fallthru
      _
    // Predicated region
    $region46: #{forward.1} parent=1 // pred_check
      _
    $region47: #{forward.1} parent=1 // pred_check_branch
      %80 = sbr.rel (0) target = $region49
    $region48: #{forward.1} parent=1 // pred_region
      %81 = dma.done [#allocation3], 128
    $region49: #{forward.1} parent=1 // pred_fallthru
      _
    // Predicated region
    $region50: #{forward.1} parent=1 // pred_check
      _
    $region51: #{forward.1} parent=1 // pred_check_branch
      %83 = sbr.rel (0) target = $region53
    $region52: #{forward.1} parent=1 // pred_region
      %84 = dma.done [#allocation5], 512
    $region53: #{forward.1} parent=1 // pred_fallthru
      _
    // Predicated region
    $region54: #{forward.1} parent=1 // pred_check
      _
    $region55: #{forward.1} parent=1 // pred_check_branch
      %86 = sbr.rel (0) target = $region57
    $region56: #{forward.1} parent=1 // pred_region
      %87 = dma.done [#allocation5], 2048
    $region57: #{forward.1} parent=1 // pred_fallthru
      _
    // Predicated region
    $region58: #{forward.1} parent=1 // pred_check
      _
    $region59: #{forward.1} parent=1 // pred_check_branch
      %89 = sbr.rel (0) target = $region61
    $region60: #{forward.1} parent=1 // pred_region
      %90 = dma.done [#allocation8], 2048
    $region61: #{forward.1} parent=1 // pred_fallthru
      _
    %v91 = vld [vmem:[#allocation2] sm:$0xff]
    %v92 = vld [vmem:[#allocation4] sm:$0xff]
    %v93 = vld [vmem:[#allocation4 + $0x8] sm:$0xff]
    %v94 = vld [vmem:[#allocation4 + $0x10] sm:$0xff]
    %v95 = vld [vmem:[#allocation4 + $0x18] sm:$0xff]
    %v96 = vld [vmem:[%s2] sm:$0x1]
    %v98 = vlaneseq
    %v99 = vshrl.u32 %v98, 7
    %v100 = vsub.s32 0, %v99
    %v101 = vrot.slane %v96, %v100
    %vm103 = vcmask 261120
    %v105 = vsel %vm103, %v91, 0
    %107 = vmatprep.subr.mxu0 0.0
    %108 = vmatpush1.msra.mxu0 %v92
    %109 = vmatprep.subr.mxu0 0.0
    %110 = vmatpush1.msra.mxu0 %v93
    %111 = vmatprep.subr.mxu0 0.0
    %112 = vmatpush1.msra.mxu0 %v94
    %113 = vmatprep.subr.mxu0 0.0
    %114 = vmatpush1.msra.mxu0 %v95
    %115 = vmatprep.subr.mxu0 0.0
    %116 = vmatpush1.msra.mxu0 0.0
    %117 = vmatprep.subr.mxu0 0.0
    %118 = vmatpush1.msra.mxu0 0.0
    %119 = vmatprep.subr.mxu0 0.0
    %120 = vmatpush1.msra.mxu0 0.0
    %121 = vmatprep.subr.mxu0 0.0
    %122 = vmatpush1.msra.mxu0 0.0
    %123 = vmatprep.subr.mxu0 0.0
    %124 = vmatpush1.msra.mxu0 0.0
    %125 = vmatprep.subr.mxu0 0.0
    %126 = vmatpush1.msra.mxu0 0.0
    %127 = vmatprep.subr.mxu0 0.0
    %128 = vmatpush1.msra.mxu0 0.0
    %129 = vmatprep.subr.mxu0 0.0
    %130 = vmatpush1.msra.mxu0 0.0
    %131 = vmatprep.subr.mxu0 0.0
    %132 = vmatpush1.msra.mxu0 0.0
    %133 = vmatprep.subr.mxu0 0.0
    %134 = vmatpush1.msra.mxu0 0.0
    %135 = vmatprep.subr.mxu0 0.0
    %136 = vmatpush1.msra.mxu0 0.0
    %137 = vmatprep.subr.mxu0 0.0
    %138 = vmatpush1.msra.mxu0 0.0
    %139 = vmatprep.subr.mxu0 0.0
    %140 = vmatpush1.msra.mxu0 0.0
    %141 = vmatprep.subr.mxu0 0.0
    %142 = vmatpush1.msra.mxu0 0.0
    %143 = vmatprep.subr.mxu0 0.0
    %144 = vmatpush1.msra.mxu0 0.0
    %145 = vmatprep.subr.mxu0 0.0
    %146 = vmatpush1.msra.mxu0 0.0
    %147 = vmatprep.subr.mxu0 0.0
    %148 = vmatpush1.msra.mxu0 0.0
    %149 = vmatprep.subr.mxu0 0.0
    %150 = vmatpush1.msra.mxu0 0.0
    %151 = vmatprep.subr.mxu0 0.0
    %152 = vmatpush1.msra.mxu0 0.0
    %153 = vmatprep.subr.mxu0 0.0
    %154 = vmatpush1.msra.mxu0 0.0
    %155 = vmatprep.subr.mxu0 0.0
    %156 = vmatpush1.msra.mxu0 0.0
    %157 = vmatprep.subr.mxu0 0.0
    %158 = vmatpush1.msra.mxu0 0.0
    %159 = vmatprep.subr.mxu0 0.0
    %160 = vmatpush1.msra.mxu0 0.0
    %161 = vmatprep.subr.mxu0 0.0
    %162 = vmatpush1.msra.mxu0 0.0
    %163 = vmatprep.subr.mxu0 0.0
    %164 = vmatpush1.msra.mxu0 0.0
    %165 = vmatprep.subr.mxu0 0.0
    %166 = vmatpush1.msra.mxu0 0.0
    %167 = vmatprep.subr.mxu0 0.0
    %168 = vmatpush1.msra.mxu0 0.0
    %169 = vmatprep.subr.mxu0 0.0
    %170 = vmatpush1.msra.mxu0 0.0
    %171 = vmatprep.mubr.f32.mxu0 0.0
    %172 = vmatmul.mubr.f32.gmra.mrb[0].mxu0 %v105
    %v173 = vpop.f32.mrb[0].mxu0
    %v174 = vadd.f32 %v101, %v173
    %v175 = vpop.f32.mrb[0].mxu0
    %176 = vdwg.mxu0
    %vm177 = vcmp.ge.f32.partialorder %v174, 0.0
    %v178 = vmul.f32 %v174, 0.01
    %v179 = vsel %vm177, %v174, %v178
    %v180 = vld [vmem:[%s3] sm:$0x1]
    %v181 = vld [vmem:[%s4] sm:$0x1]
    %182 = vadd.xlane.f32.xlu0 %v179
    %v183 = vpop.xlane.xlu0 %182
    %v184 = vmul.f32 %v179, %v179
    %185 = vadd.xlane.f32.xlu0 %v184
    %v186 = vpop.xlane.xlu0 %185
    %v187 = vmul.f32 %v183, 0.01
    %v188 = vmul.f32 %v186, 0.01
    %v189 = vmul.f32 %v187, %v187
    %v190 = vsub.f32 %v188, %v189
    %v191 = vadd.f32 %v190, 1e-05
    %v192 = vrsqrt.pop %v191
    %v193 = vsub.f32 %v179, %v187
    %v194 = vmul.f32 %v193, %v192
    %v196 = vlaneseq
    %v197 = vshrl.u32 %v196, 7
    %v198 = vsub.s32 0, %v197
    %v199 = vrot.slane %v180, %v198
    %v201 = vmul.f32 %v194, %v199
    %v203 = vlaneseq
    %v204 = vshrl.u32 %v203, 7
    %v205 = vsub.s32 0, %v204
    %v206 = vrot.slane %v181, %v205
    %v208 = vadd.f32 %v201, %v206
    %v209 = vld [vmem:[#allocation6] sm:$0xff]
    %v210 = vld [vmem:[#allocation6 + $0x8] sm:$0xff]
    %v211 = vld [vmem:[#allocation6 + $0x10] sm:$0xff]
    %v212 = vld [vmem:[#allocation6 + $0x18] sm:$0xff]
    %v213 = vld [vmem:[#allocation6 + $0x20] sm:$0xff]
    %v214 = vld [vmem:[#allocation6 + $0x28] sm:$0xff]
    %v215 = vld [vmem:[#allocation6 + $0x30] sm:$0xff]
    %v216 = vld [vmem:[#allocation6 + $0x38] sm:$0xff]
    %v217 = vld [vmem:[#allocation6 + $0x40] sm:$0xff]
    %v218 = vld [vmem:[#allocation6 + $0x48] sm:$0xff]
    %v219 = vld [vmem:[#allocation6 + $0x50] sm:$0xff]
    %v220 = vld [vmem:[#allocation6 + $0x58] sm:$0xff]
    %v221 = vld [vmem:[#allocation6 + $0x60] sm:$0xff]
    %v222 = vld [vmem:[#allocation6 + $0x68] sm:$0xff]
    %v223 = vld [vmem:[#allocation6 + $0x70] sm:$0xff]
    %v224 = vld [vmem:[#allocation6 + $0x78] sm:$0xff]
    %v225 = vld [vmem:[%s6] sm:$0x1]
    %v227 = vlaneseq
    %v228 = vshrl.u32 %v227, 7
    %v229 = vsub.s32 0, %v228
    %v230 = vrot.slane %v225, %v229
    %232 = vmatprep.subr.mxu0 0.0
    %233 = vmatpush1.msra.mxu0 %v209
    %234 = vmatprep.subr.mxu0 0.0
    %235 = vmatpush1.msra.mxu0 %v210
    %236 = vmatprep.subr.mxu0 0.0
    %237 = vmatpush1.msra.mxu0 %v211
    %238 = vmatprep.subr.mxu0 0.0
    %239 = vmatpush1.msra.mxu0 %v212
    %240 = vmatprep.subr.mxu0 0.0
    %241 = vmatpush1.msra.mxu0 %v213
    %242 = vmatprep.subr.mxu0 0.0
    %243 = vmatpush1.msra.mxu0 %v214
    %244 = vmatprep.subr.mxu0 0.0
    %245 = vmatpush1.msra.mxu0 %v215
    %246 = vmatprep.subr.mxu0 0.0
    %247 = vmatpush1.msra.mxu0 %v216
    %248 = vmatprep.subr.mxu0 0.0
    %249 = vmatpush1.msra.mxu0 %v217
    %250 = vmatprep.subr.mxu0 0.0
    %251 = vmatpush1.msra.mxu0 %v218
    %252 = vmatprep.subr.mxu0 0.0
    %253 = vmatpush1.msra.mxu0 %v219
    %254 = vmatprep.subr.mxu0 0.0
    %255 = vmatpush1.msra.mxu0 %v220
    %256 = vmatprep.subr.mxu0 0.0
    %257 = vmatpush1.msra.mxu0 %v221
    %258 = vmatprep.subr.mxu0 0.0
    %259 = vmatpush1.msra.mxu0 %v222
    %260 = vmatprep.subr.mxu0 0.0
    %261 = vmatpush1.msra.mxu0 %v223
    %262 = vmatprep.subr.mxu0 0.0
    %263 = vmatpush1.msra.mxu0 %v224
    %264 = vmatprep.subr.mxu0 0.0
    %265 = vmatpush1.msra.mxu0 0.0
    %266 = vmatprep.subr.mxu0 0.0
    %267 = vmatpush1.msra.mxu0 0.0
    %268 = vmatprep.subr.mxu0 0.0
    %269 = vmatpush1.msra.mxu0 0.0
    %270 = vmatprep.subr.mxu0 0.0
    %271 = vmatpush1.msra.mxu0 0.0
    %272 = vmatprep.subr.mxu0 0.0
    %273 = vmatpush1.msra.mxu0 0.0
    %274 = vmatprep.subr.mxu0 0.0
    %275 = vmatpush1.msra.mxu0 0.0
    %276 = vmatprep.subr.mxu0 0.0
    %277 = vmatpush1.msra.mxu0 0.0
    %278 = vmatprep.subr.mxu0 0.0
    %279 = vmatpush1.msra.mxu0 0.0
    %280 = vmatprep.subr.mxu0 0.0
    %281 = vmatpush1.msra.mxu0 0.0
    %282 = vmatprep.subr.mxu0 0.0
    %283 = vmatpush1.msra.mxu0 0.0
    %284 = vmatprep.subr.mxu0 0.0
    %285 = vmatpush1.msra.mxu0 0.0
    %286 = vmatprep.subr.mxu0 0.0
    %287 = vmatpush1.msra.mxu0 0.0
    %288 = vmatprep.subr.mxu0 0.0
    %289 = vmatpush1.msra.mxu0 0.0
    %290 = vmatprep.subr.mxu0 0.0
    %291 = vmatpush1.msra.mxu0 0.0
    %292 = vmatprep.subr.mxu0 0.0
    %293 = vmatpush1.msra.mxu0 0.0
    %294 = vmatprep.subr.mxu0 0.0
    %295 = vmatpush1.msra.mxu0 0.0
    %296 = vmatprep.mubr.f32.mxu0 0.0
    %297 = vmatmul.mubr.f32.gmra.mrb[0].mxu0 %v208
    %v298 = vpop.f32.mrb[0].mxu0
    %v299 = vadd.f32 %v230, %v298
    %v300 = vpop.f32.mrb[0].mxu0
    %301 = vdwg.mxu0
    %vm302 = vcmp.ge.f32.partialorder %v299, 0.0
    %v303 = vmul.f32 %v299, 0.01
    %v304 = vsel %vm302, %v299, %v303
    %v305 = vld [vmem:[%s7] sm:$0x1]
    %v306 = vld [vmem:[%s8] sm:$0x1]
    %307 = vadd.xlane.f32.xlu0 %v304
    %v308 = vpop.xlane.xlu0 %307
    %v309 = vmul.f32 %v304, %v304
    %310 = vadd.xlane.f32.xlu0 %v309
    %v311 = vpop.xlane.xlu0 %310
    %v312 = vmul.f32 %v308, 0.01
    %v313 = vmul.f32 %v311, 0.01
    %v314 = vmul.f32 %v312, %v312
    %v315 = vsub.f32 %v313, %v314
    %v316 = vadd.f32 %v315, 1e-05
    %v317 = vrsqrt.pop %v316
    %v318 = vsub.f32 %v304, %v312
    %v319 = vmul.f32 %v318, %v317
    %v321 = vlaneseq
    %v322 = vshrl.u32 %v321, 7
    %v323 = vsub.s32 0, %v322
    %v324 = vrot.slane %v305, %v323
    %v326 = vmul.f32 %v319, %v324
    %v328 = vlaneseq
    %v329 = vshrl.u32 %v328, 7
    %v330 = vsub.s32 0, %v329
    %v331 = vrot.slane %v306, %v330
    %v333 = vadd.f32 %v326, %v331
    %v334 = vld [vmem:[#allocation7] sm:$0xff]
    %v335 = vld [vmem:[#allocation7 + $0x8] sm:$0xff]
    %v336 = vld [vmem:[#allocation7 + $0x10] sm:$0xff]
    %v337 = vld [vmem:[#allocation7 + $0x18] sm:$0xff]
    %v338 = vld [vmem:[#allocation7 + $0x20] sm:$0xff]
    %v339 = vld [vmem:[#allocation7 + $0x28] sm:$0xff]
    %v340 = vld [vmem:[#allocation7 + $0x30] sm:$0xff]
    %v341 = vld [vmem:[#allocation7 + $0x38] sm:$0xff]
    %v342 = vld [vmem:[#allocation7 + $0x40] sm:$0xff]
    %v343 = vld [vmem:[#allocation7 + $0x48] sm:$0xff]
    %v344 = vld [vmem:[#allocation7 + $0x50] sm:$0xff]
    %v345 = vld [vmem:[#allocation7 + $0x58] sm:$0xff]
    %v346 = vld [vmem:[#allocation7 + $0x60] sm:$0xff]
    %v347 = vld [vmem:[#allocation7 + $0x68] sm:$0xff]
    %v348 = vld [vmem:[#allocation7 + $0x70] sm:$0xff]
    %v349 = vld [vmem:[#allocation7 + $0x78] sm:$0xff]
    %v350 = vld [vmem:[%s10] sm:$0x1]
    %v352 = vlaneseq
    %v353 = vshrl.u32 %v352, 7
    %v354 = vsub.s32 0, %v353
    %v355 = vrot.slane %v350, %v354
    %357 = vmatprep.subr.mxu0 0.0
    %358 = vmatpush1.msra.mxu0 %v334
    %359 = vmatprep.subr.mxu0 0.0
    %360 = vmatpush1.msra.mxu0 %v335
    %361 = vmatprep.subr.mxu0 0.0
    %362 = vmatpush1.msra.mxu0 %v336
    %363 = vmatprep.subr.mxu0 0.0
    %364 = vmatpush1.msra.mxu0 %v337
    %365 = vmatprep.subr.mxu0 0.0
    %366 = vmatpush1.msra.mxu0 %v338
    %367 = vmatprep.subr.mxu0 0.0
    %368 = vmatpush1.msra.mxu0 %v339
    %369 = vmatprep.subr.mxu0 0.0
    %370 = vmatpush1.msra.mxu0 %v340
    %371 = vmatprep.subr.mxu0 0.0
    %372 = vmatpush1.msra.mxu0 %v341
    %373 = vmatprep.subr.mxu0 0.0
    %374 = vmatpush1.msra.mxu0 %v342
    %375 = vmatprep.subr.mxu0 0.0
    %376 = vmatpush1.msra.mxu0 %v343
    %377 = vmatprep.subr.mxu0 0.0
    %378 = vmatpush1.msra.mxu0 %v344
    %379 = vmatprep.subr.mxu0 0.0
    %380 = vmatpush1.msra.mxu0 %v345
    %381 = vmatprep.subr.mxu0 0.0
    %382 = vmatpush1.msra.mxu0 %v346
    %383 = vmatprep.subr.mxu0 0.0
    %384 = vmatpush1.msra.mxu0 %v347
    %385 = vmatprep.subr.mxu0 0.0
    %386 = vmatpush1.msra.mxu0 %v348
    %387 = vmatprep.subr.mxu0 0.0
    %388 = vmatpush1.msra.mxu0 %v349
    %389 = vmatprep.subr.mxu0 0.0
    %390 = vmatpush1.msra.mxu0 0.0
    %391 = vmatprep.subr.mxu0 0.0
    %392 = vmatpush1.msra.mxu0 0.0
    %393 = vmatprep.subr.mxu0 0.0
    %394 = vmatpush1.msra.mxu0 0.0
    %395 = vmatprep.subr.mxu0 0.0
    %396 = vmatpush1.msra.mxu0 0.0
    %397 = vmatprep.subr.mxu0 0.0
    %398 = vmatpush1.msra.mxu0 0.0
    %399 = vmatprep.subr.mxu0 0.0
    %400 = vmatpush1.msra.mxu0 0.0
    %401 = vmatprep.subr.mxu0 0.0
    %402 = vmatpush1.msra.mxu0 0.0
    %403 = vmatprep.subr.mxu0 0.0
    %404 = vmatpush1.msra.mxu0 0.0
    %405 = vmatprep.subr.mxu0 0.0
    %406 = vmatpush1.msra.mxu0 0.0
    %407 = vmatprep.subr.mxu0 0.0
    %408 = vmatpush1.msra.mxu0 0.0
    %409 = vmatprep.subr.mxu0 0.0
    %410 = vmatpush1.msra.mxu0 0.0
    %411 = vmatprep.subr.mxu0 0.0
    %412 = vmatpush1.msra.mxu0 0.0
    %413 = vmatprep.subr.mxu0 0.0
    %414 = vmatpush1.msra.mxu0 0.0
    %415 = vmatprep.subr.mxu0 0.0
    %416 = vmatpush1.msra.mxu0 0.0
    %417 = vmatprep.subr.mxu0 0.0
    %418 = vmatpush1.msra.mxu0 0.0
    %419 = vmatprep.subr.mxu0 0.0
    %420 = vmatpush1.msra.mxu0 0.0
    %421 = vmatprep.mubr.f32.mxu0 0.0
    %422 = vmatmul.mubr.f32.gmra.mrb[0].mxu0 %v333
    %v423 = vpop.f32.mrb[0].mxu0
    %v424 = vadd.f32 %v355, %v423
    %v425 = vpop.f32.mrb[0].mxu0
    %426 = vdwg.mxu0
    %427 = vmax.xlane.f32.xlu0 %v424
    %v428 = vpop.xlane.xlu0 %427
    %v429 = vsub.f32 %v424, %v428
    %v430 = vmul.f32 %v429, 1.442695
    %v431 = vpow.pop %v430
    %432 = vadd.xlane.f32.xlu0 %v431
    %v433 = vpop.xlane.xlu0 %432
    %v434 = vlog2.pop %v433
    %v435 = vmul.f32 %v434, 0.6931472
    %v436 = vadd.f32 %v428, %v435
    %v437 = vlaneseq
    %v438 = vand.u32 %v437, 127
    %vm439 = vcmp.eq.s32.totalorder %v438, 6
    %v440 = vsel %vm439, %v436, %v424
    %441 = vst [vmem:[%s11] sm:$0xff] %v440
    // Predicated region
    $region62: #{forward.1} parent=1 // pred_check
      _
    $region63: #{forward.1} parent=1 // pred_check_branch
      %443 = sbr.rel (0) target = $region65
    $region64: #{forward.1} parent=1 // pred_region
      _
    $region65: #{forward.1} parent=1 // pred_fallthru
      _
    // Predicated region
    $region66: #{forward.1} parent=1 // pred_check
      _
    $region67: #{forward.1} parent=1 // pred_check_branch
      %445 = sbr.rel (0) target = $region69
    $region68: #{forward.1} parent=1 // pred_region
      _
    $region69: #{forward.1} parent=1 // pred_fallthru
      _
    %446 = vsyncpa [#allocation3], 1
    %447 = vsyncpa [#allocation5], 1
    %448 = vsyncpa [#allocation8], 1

</llo_original>
